<compile_context>
chip_gen: v5e
topology: v5e:2x2
jax: 0.10.0
libtpu: 0.0.40
codegen_flags: <defaults>
</compile_context>

<pallas_src>
import functools

import jax
import jax.numpy as jnp
from jax.experimental import pallas as pl
from jax.experimental.pallas import tpu as pltpu

_LANES = 128          # full lane width: unmasked vregs for h / logits / LSE
_SUBLANES_BF16 = 16   # bf16 packs 16 rows per vreg along sublanes
_NEG_MASK = -1e30     # pad-lane logit fill so max / exp ignore pad lanes


def _round_up(n: int, m: int) -> int:
    return (n + m - 1) // m * m


def pack_policy_params(w1, b1, w2, b2):
    """Pack policy-head parameters ONCE at init time.

    Returns:
      params: bf16 [R, 128] blob  (w1 rows, then w2 rows padded to 128)
              pad columns/rows are zero.
      bias:   f32  [8, 128] tile  (row 0 = b1 zero-padded,
                                   row 1 = b2 with pad lanes = -1e30).
      meta:   static ints for the kernel (offsets / dims).
    """
    d_in, hidden = w1.shape
    h2, n_actions = w2.shape
    assert h2 == hidden
    assert hidden <= _LANES and n_actions <= _LANES

    r_w1 = _round_up(d_in, _SUBLANES_BF16)
    r_w2 = _LANES  # contraction dim of the 2nd matmul == lane width of h
    off_w1, off_w2 = 0, r_w1

    w1p = jnp.zeros((r_w1, _LANES), jnp.float32).at[:d_in, :hidden].set(w1)
    w2p = jnp.zeros((r_w2, _LANES), jnp.float32).at[:hidden, :n_actions].set(w2)
    params = jnp.concatenate([w1p, w2p], axis=0).astype(jnp.bfloat16)

    bias = jnp.zeros((8, _LANES), jnp.float32)
    bias = bias.at[0, :hidden].set(b1.reshape(-1))
    bias = bias.at[1, :].set(_NEG_MASK)            # mask padded logit lanes
    bias = bias.at[1, :n_actions].set(b2.reshape(-1))

    meta = dict(d_in=d_in, hidden=hidden, n_actions=n_actions,
                off_w1=off_w1, off_w2=off_w2)
    return params, bias, meta


def _policy_pretrain_kernel(x_ref, params_ref, bias_ref, a_ref, loss_ref, *,
                            d_in, n_actions, off_w1, off_w2):
    x = x_ref[...]                                    # [B, D_in] f32
    p = params_ref[...]                               # [R, 128]  bf16 blob
    bias = bias_ref[...]                              # [8, 128]  f32
    a = a_ref[...]                                    # [B, 1]    int32

    # Clamp expert actions in-kernel (matches take_along_axis clamping
    # semantics; keeps the one-hot select correct even for OOB actions).
    a = jnp.clip(a, 0, n_actions - 1)

    # Unpack (static, sublane-aligned slices; full 128-lane columns).
    w1 = p[off_w1:off_w1 + d_in, :]                   # [D_in, 128] bf16
    w2 = p[off_w2:off_w2 + _LANES, :]                 # [128, 128]  bf16
    b1 = bias[0:1, :]                                 # [1, 128] f32 (pad = 0)
    b2 = bias[1:2, :]                                 # [1, 128] f32 (pad = -1e30)

    # Policy MLP head: bf16 MXU feed, f32 accumulation, f32 elementwise.
    x_bf = x.astype(jnp.bfloat16)
    h = jnp.dot(x_bf, w1, preferred_element_type=jnp.float32) + b1     # [B, 128]
    h = jnp.maximum(h, 0.0)                                            # ReLU (pad lanes stay 0)
    logits = jnp.dot(h.astype(jnp.bfloat16), w2,
                     preferred_element_type=jnp.float32) + b2          # [B, 128]

    # Fused expert NLL:  -log_prob(a_b) = m_b + lse_b - logit_{b, a_b}
    # Pad lanes carry -1e30 -> never the max, exp underflows to 0, never selected.
    m = jnp.max(logits, axis=-1, keepdims=True)                          # [B, 1]
    lse = jnp.log(jnp.sum(jnp.exp(logits - m), axis=-1, keepdims=True))  # [B, 1]
    lane_idx = jax.lax.broadcasted_iota(jnp.int32, logits.shape, 1)
    sel = jnp.sum(jnp.where(lane_idx == a, logits, 0.0),
                  axis=-1, keepdims=True)                                # [B, 1]

    # expert_loss = -sum_b log pi(a_b | x_b)
    loss_ref[0, 0] = jnp.sum(m + lse - sel)


def policy_pretrain_loss(x, a, params, bias, meta):
    """Expert pretraining loss: -sum_b log pi(a_b | x_b).

    `params`, `bias`, `meta` come from pack_policy_params (computed once)."""
    B = x.shape[0]
    a2d = a.reshape(B, 1).astype(jnp.int32)

    kernel = functools.partial(
        _policy_pretrain_kernel,
        d_in=meta["d_in"], n_actions=meta["n_actions"],
        off_w1=meta["off_w1"], off_w2=meta["off_w2"])

    flops = 2 * B * (meta["d_in"] * _LANES + _LANES * _LANES)
    bytes_accessed = (x.size * 4 + params.size * 2 + bias.size * 4
                      + B * 4 + 4)
    cost = pl.CostEstimate(flops=flops,
                           transcendentals=B * _LANES,
                           bytes_accessed=bytes_accessed)

    vmem = pl.BlockSpec(memory_space=pltpu.MemorySpace.VMEM)
    loss = pl.pallas_call(
        kernel,
        out_shape=jax.ShapeDtypeStruct((1, 1), jnp.float32),
        in_specs=[vmem, vmem, vmem, vmem],
        out_specs=pl.BlockSpec(memory_space=pltpu.MemorySpace.SMEM),
        cost_estimate=cost,
    )(x, params, bias, a2d)
    return loss[0, 0]


def _reference_loss(x, w1, b1, w2, b2, a):
    # Reference mirrors the kernel: bf16 MXU feed (weights + activations),
    # f32 biases, f32 accumulation / elementwise.
    def f(t):
        return t.astype(jnp.bfloat16).astype(jnp.float32)

    hp = jax.lax.Precision.HIGHEST
    h = jnp.maximum(jnp.dot(f(x), f(w1), precision=hp) + b1, 0.0)
    logits = jnp.dot(f(h), f(w2), precision=hp) + b2
    logp = jax.nn.log_softmax(logits, axis=-1)
    lp_a = jnp.take_along_axis(logp, a.reshape(-1, 1).astype(jnp.int32),
                               axis=-1)[:, 0]
    return -jnp.sum(lp_a)


if __name__ == "__main__":
    # Small shapes consistent with the module's forward:
    #   batch of 8 observations, 32-dim state embedding, hidden_size=32,
    #   16 discrete actions.
    B, D_IN, HIDDEN, N_ACTIONS = 8, 32, 32, 16

    key = jax.random.PRNGKey(0)
    k_x, k_w1, k_b1, k_w2, k_b2, k_a = jax.random.split(key, 6)

    # Deterministic synthetic parameters (shapes from RJTPolicyNet head).
    x = jax.random.normal(k_x, (B, D_IN), dtype=jnp.float32)
    w1 = jax.random.normal(k_w1, (D_IN, HIDDEN), dtype=jnp.float32) * 0.1
    b1 = jax.random.normal(k_b1, (1, HIDDEN), dtype=jnp.float32) * 0.01
    w2 = jax.random.normal(k_w2, (HIDDEN, N_ACTIONS), dtype=jnp.float32) * 0.1
    b2 = jax.random.normal(k_b2, (1, N_ACTIONS), dtype=jnp.float32) * 0.01
    a = jax.random.randint(k_a, (B,), 0, N_ACTIONS, dtype=jnp.int32)

    # Pack parameters ONCE (init-time); reuse across loss calls.
    params, bias, meta = pack_policy_params(w1, b1, w2, b2)
    params = jax.block_until_ready(params)
    bias = jax.block_until_ready(bias)

    loss = policy_pretrain_loss(x, a, params, bias, meta)
    jax.block_until_ready(loss)

    ref = _reference_loss(x, w1, b1, w2, b2, a)
    assert jnp.allclose(loss, ref, rtol=1e-3, atol=1e-3), (loss, ref)

    print("KERNEL_OK")
</pallas_src>

<mosaic_0001>
module attributes {stable_mosaic.version = 11 : i64} {
  func.func @_policy_pretrain_kernel(%arg0: memref<8x32xf32, #tpu.memory_space<vmem>>, %arg1: memref<160x128xbf16, #tpu.memory_space<vmem>>, %arg2: memref<8x128xf32, #tpu.memory_space<vmem>>, %arg3: memref<8x1xi32, #tpu.memory_space<vmem>>, %arg4: memref<1x1xf32, #tpu.memory_space<smem>>) attributes {dimension_semantics = [], scalar_prefetch = 0 : i64, scratch_operands = 0 : i64, tpu.core_type = #tpu.core_type<tc>} {
    %c0 = arith.constant 0 : index
    %c0_0 = arith.constant 0 : index
    %0 = vector.load %arg0[%c0, %c0_0] : memref<8x32xf32, #tpu.memory_space<vmem>>, vector<8x32xf32>
    %c0_1 = arith.constant 0 : index
    %c0_2 = arith.constant 0 : index
    %1 = vector.load %arg1[%c0_1, %c0_2] : memref<160x128xbf16, #tpu.memory_space<vmem>>, vector<160x128xbf16>
    %c0_3 = arith.constant 0 : index
    %c0_4 = arith.constant 0 : index
    %2 = vector.load %arg2[%c0_3, %c0_4] : memref<8x128xf32, #tpu.memory_space<vmem>>, vector<8x128xf32>
    %c0_5 = arith.constant 0 : index
    %c0_6 = arith.constant 0 : index
    %3 = vector.load %arg3[%c0_5, %c0_6] : memref<8x1xi32, #tpu.memory_space<vmem>>, vector<8x1xi32>
    %c0_i32 = arith.constant 0 : i32
    %c15_i32 = arith.constant 15 : i32
    %4 = vector.broadcast %c0_i32 : i32 to vector<8x1xi32>
    %5 = arith.maxsi %4, %3 : vector<8x1xi32>
    %6 = vector.broadcast %c15_i32 : i32 to vector<8x1xi32>
    %7 = arith.minsi %6, %5 : vector<8x1xi32>
    %8 = vector.extract_strided_slice %1 {offsets = [0, 0], sizes = [32, 128], strides = [1, 1]} : vector<160x128xbf16> to vector<32x128xbf16>
    %9 = vector.extract_strided_slice %1 {offsets = [32, 0], sizes = [128, 128], strides = [1, 1]} : vector<160x128xbf16> to vector<128x128xbf16>
    %10 = vector.extract_strided_slice %2 {offsets = [0, 0], sizes = [1, 128], strides = [1, 1]} : vector<8x128xf32> to vector<1x128xf32>
    %11 = vector.extract_strided_slice %2 {offsets = [1, 0], sizes = [1, 128], strides = [1, 1]} : vector<8x128xf32> to vector<1x128xf32>
    %12 = arith.truncf %0 : vector<8x32xf32> to vector<8x32xbf16>
    %cst = arith.constant dense<0.000000e+00> : vector<8x128xf32>
    %13 = tpu.matmul %12, %8, %cst {dimension_numbers = #tpu.dot_dimension_numbers<[1], [0], [0], [1], [0, 0, 1, 1], [], []>} : vector<8x32xbf16>, vector<32x128xbf16>, vector<8x128xf32> -> vector<8x128xf32>
    %14 = vector.broadcast %10 : vector<1x128xf32> to vector<8x128xf32>
    %15 = arith.addf %13, %14 : vector<8x128xf32>
    %cst_7 = arith.constant 0.000000e+00 : f32
    %16 = vector.broadcast %cst_7 : f32 to vector<8x128xf32>
    %17 = arith.maximumf %15, %16 : vector<8x128xf32>
    %18 = arith.truncf %17 : vector<8x128xf32> to vector<8x128xbf16>
    %cst_8 = arith.constant dense<0.000000e+00> : vector<8x128xf32>
    %19 = tpu.matmul %18, %9, %cst_8 {dimension_numbers = #tpu.dot_dimension_numbers<[1], [0], [0], [1], [0, 0, 1, 1], [], []>} : vector<8x128xbf16>, vector<128x128xbf16>, vector<8x128xf32> -> vector<8x128xf32>
    %20 = vector.broadcast %11 : vector<1x128xf32> to vector<8x128xf32>
    %21 = arith.addf %19, %20 : vector<8x128xf32>
    %cst_9 = arith.constant dense<0xFF800000> : vector<8xf32>
    %22 = vector.multi_reduction <maximumf>, %21, %cst_9 [1] : vector<8x128xf32> to vector<8xf32>
    %23 = vector.shape_cast %22 : vector<8xf32> to vector<8x1xf32>
    %24 = vector.broadcast %23 : vector<8x1xf32> to vector<8x128xf32>
    %25 = arith.subf %21, %24 : vector<8x128xf32>
    %26 = math.exp %25 : vector<8x128xf32>
    %cst_10 = arith.constant dense<0.000000e+00> : vector<8xf32>
    %27 = vector.multi_reduction <add>, %26, %cst_10 [1] : vector<8x128xf32> to vector<8xf32>
    %28 = vector.shape_cast %27 : vector<8xf32> to vector<8x1xf32>
    %29 = math.log %28 : vector<8x1xf32>
    %30 = tpu.iota {dimensions = array<i32: 1>} : vector<8x128xi32>
    %31 = vector.broadcast %7 : vector<8x1xi32> to vector<8x128xi32>
    %32 = arith.cmpi eq, %30, %31 : vector<8x128xi32>
    %cst_11 = arith.constant 0.000000e+00 : f32
    %33 = vector.broadcast %cst_11 : f32 to vector<8x128xf32>
    %34 = arith.select %32, %21, %33 : vector<8x128xi1>, vector<8x128xf32>
    %cst_12 = arith.constant dense<0.000000e+00> : vector<8xf32>
    %35 = vector.multi_reduction <add>, %34, %cst_12 [1] : vector<8x128xf32> to vector<8xf32>
    %36 = vector.shape_cast %35 : vector<8xf32> to vector<8x1xf32>
    %37 = arith.addf %23, %29 : vector<8x1xf32>
    %38 = arith.subf %37, %36 : vector<8x1xf32>
    %39 = vector.shape_cast %38 : vector<8x1xf32> to vector<1x8x1xf32>
    %cst_13 = arith.constant dense<0.000000e+00> : vector<1xf32>
    %40 = vector.multi_reduction <add>, %39, %cst_13 [1, 2] : vector<1x8x1xf32> to vector<1xf32>
    %41 = vector.shape_cast %40 : vector<1xf32> to vector<1x1x1xf32>
    %42 = vector.extract %41[0, 0, 0] : f32 from vector<1x1x1xf32>
    %c0_14 = arith.constant 0 : index
    %c0_15 = arith.constant 0 : index
    %43 = memref.load %arg4[%c0_14, %c0_15] : memref<1x1xf32, #tpu.memory_space<smem>>
    memref.store %42, %arg4[%c0_14, %c0_15] : memref<1x1xf32, #tpu.memory_space<smem>>
    return
  }
}

</mosaic_0001>

<llo_original>
// kernel: tpu_custom_call.1
$region0: #{tpu_custom_call.1}
  #allocation0 [shape = 'u32[]', space=smem, size = 0x4, offset = 0x4, fixed_abs, tag = 'smem constant byte address 0x4 - core index']
  #allocation1 [shape = 'u32[72,128]{1,0:T(1,128)}', space=vmem, size = 0x9000, scoped, tag = 'internal scratch']
  %s0 = inlined_call_operand.vmem [shape: f32[8,32], index: 0, kind: input, shape index: {}]
  %s1 = inlined_call_operand.hbm [shape: bf16[160,128], index: 1, kind: input, shape index: {}]
  %s2 = inlined_call_operand.hbm [shape: f32[8,128], index: 2, kind: input, shape index: {}]
  %s3 = inlined_call_operand.vmem [shape: s32[8,1], index: 3, kind: input, shape index: {}]
  %s4 = inlined_call_operand.hbm [shape: f32[1,1], index: 4, kind: output, shape index: {}]
  %s5 = sld [smem:[#allocation0]]
  $region34: #{tpu_custom_call.1} parent=0
    _
  %s7 = ssub.s32 1, %s5
  %s8 = scalar_select 0, %s7, %s5
  $region1: #{tpu_custom_call.1} parent=0
    #allocation2 [shape = 'u8[40960]{0}', space=vmem, size = 0xa000, scoped, tag = 'input window, operand 1, single buffered']
    #allocation3 [shape = 's32[1]{0}', space=sflag, size = 0x4, scoped, tag = 'scoped memory for tpu_custom_call.1']
    #allocation4 [shape = 's32[1]{0}', space=sflag, size = 0x4, scoped, tag = 'scoped memory for tpu_custom_call.1']
    #allocation5 [shape = 'u8[4096]{0}', space=vmem, size = 0x1000, scoped, tag = 'input window, operand 2, single buffered']
    #allocation6 [shape = 's32[1]{0}', space=sflag, size = 0x4, scoped, tag = 'scoped memory for tpu_custom_call.1']
    #allocation7 [shape = 'u8[512]{0}', space=smem, size = 0x200, scoped, tag = 'output window, operand 0, single buffered']
    %9 = vsyncpa [#allocation3], 0
    %10 = vsyncpa [#allocation6], 0
    %11 = vsyncpa [#allocation4], 0
    // Predicated region
    $region2: #{tpu_custom_call.1} parent=1 // pred_check
      _
    $region3: #{tpu_custom_call.1} parent=1 // pred_check_branch
      %13 = sbr.rel (0) target = $region5
    $region4: #{tpu_custom_call.1} parent=1 // pred_region
      _
    $region5: #{tpu_custom_call.1} parent=1 // pred_fallthru
      _
    // Predicated region
    $region6: #{tpu_custom_call.1} parent=1 // pred_check
      _
    $region7: #{tpu_custom_call.1} parent=1 // pred_check_branch
      %15 = sbr.rel (0) target = $region9
    $region8: #{tpu_custom_call.1} parent=1 // pred_region
      %17 = vsyncadd [#allocation3], 0
      %s18 = sshll.u32 %s1, 4
      %s19 = int_to_ptr.hbm [resolvable:$true] %s18
      %s20 = sshll.u32 [#allocation2], 4
      %s21 = int_to_ptr.vmem [resolvable:$true] %s20
      %26 = dma.hbm_to_vmem [thread:$0]  %s19, 1280, %s21, [#allocation3], 64, 64, 4
    $region9: #{tpu_custom_call.1} parent=1 // pred_fallthru
      _
    // Predicated region
    $region10: #{tpu_custom_call.1} parent=1 // pred_check
      _
    $region11: #{tpu_custom_call.1} parent=1 // pred_check_branch
      %28 = sbr.rel (0) target = $region13
    $region12: #{tpu_custom_call.1} parent=1 // pred_region
      %30 = vsyncadd [#allocation6], 0
      %s32 = sshll.u32 %s2, 4
      %s33 = int_to_ptr.hbm [resolvable:$true] %s32
      %s34 = sshll.u32 [#allocation5], 4
      %s35 = int_to_ptr.vmem [resolvable:$true] %s34
      %37 = dma.hbm_to_vmem [thread:$0]  %s33, 128, %s35, [#allocation6]
    $region13: #{tpu_custom_call.1} parent=1 // pred_fallthru
      _
    // Predicated region
    $region14: #{tpu_custom_call.1} parent=1 // pred_check
      _
    $region15: #{tpu_custom_call.1} parent=1 // pred_check_branch
      %39 = sbr.rel (0) target = $region17
    $region16: #{tpu_custom_call.1} parent=1 // pred_region
      _
    $region17: #{tpu_custom_call.1} parent=1 // pred_fallthru
      _
    // Predicated region
    $region18: #{tpu_custom_call.1} parent=1 // pred_check
      _
    $region19: #{tpu_custom_call.1} parent=1 // pred_check_branch
      %41 = sbr.rel (0) target = $region21
    $region20: #{tpu_custom_call.1} parent=1 // pred_region
      %43 = dma.done [#allocation3], 1280
    $region21: #{tpu_custom_call.1} parent=1 // pred_fallthru
      _
    // Predicated region
    $region22: #{tpu_custom_call.1} parent=1 // pred_check
      _
    $region23: #{tpu_custom_call.1} parent=1 // pred_check_branch
      %45 = sbr.rel (0) target = $region25
    $region24: #{tpu_custom_call.1} parent=1 // pred_region
      %47 = dma.done [#allocation6], 128
    $region25: #{tpu_custom_call.1} parent=1 // pred_fallthru
      _
    %v49 = vld [vmem:[%s0] sm:$0xff]
    %v50 = vld [vmem:[#allocation2] sm:$0xf]
    %v51 = vld [vmem:[#allocation2 + $0x4] sm:$0xf]
    %v52 = vld [vmem:[#allocation2 + $0x8] sm:$0xf]
    %v53 = vld [vmem:[#allocation2 + $0xc] sm:$0xf]
    %v54 = vld [vmem:[#allocation2 + $0x10] sm:$0xf]
    %v55 = vld [vmem:[#allocation2 + $0x14] sm:$0xf]
    %v56 = vld [vmem:[#allocation2 + $0x18] sm:$0xf]
    %v57 = vld [vmem:[#allocation2 + $0x1c] sm:$0xf]
    %v58 = vld [vmem:[#allocation2 + $0x20] sm:$0xf]
    %v59 = vld [vmem:[#allocation2 + $0x24] sm:$0xf]
    %v60 = vld [vmem:[#allocation2 + $0x28] sm:$0xf]
    %v61 = vld [vmem:[#allocation2 + $0x2c] sm:$0xf]
    %v62 = vld [vmem:[#allocation2 + $0x30] sm:$0xf]
    %v63 = vld [vmem:[#allocation2 + $0x34] sm:$0xf]
    %v64 = vld [vmem:[#allocation2 + $0x38] sm:$0xf]
    %v65 = vld [vmem:[#allocation2 + $0x3c] sm:$0xf]
    %v66 = vld [vmem:[#allocation2 + $0x40] sm:$0xf]
    %v67 = vld [vmem:[#allocation2 + $0x44] sm:$0xf]
    %v68 = vld [vmem:[#allocation2 + $0x48] sm:$0xf]
    %v69 = vld [vmem:[#allocation2 + $0x4c] sm:$0xf]
    %v70 = vld [vmem:[#allocation5] sm:$0xff]
    %v71 = vld [vmem:[%s3] sm:$0xff]
    %vm72 = vcmp.gt.s32.totalorder %v71, 0
    %v73 = vsel %vm72, %v71, 0
    %vm74 = vcmp.lt.s32.totalorder %v73, 15
    %v75 = vsel %vm74, %v73, 15
    %v76 = vpack.c.bf16 %v49, %v49
    %v77 = vperm.slane %v70, 0
    %v82 = vunpack.c.l.b16 %v50
    %v83 = vunpack.c.l.b16 %v51
    %v84 = vunpack.c.l.b16 %v52
    %v85 = vunpack.c.l.b16 %v53
    %v86 = vpack.c.b16 %v83, %v82
    %v87 = vpack.c.b16 %v85, %v84
    %vm90 = vcmask 261120
    %v92 = vsel %vm90, %v76, 0
    %94 = vmatpush.bf16.msra.mxu0 0
    %95 = vmatpush.bf16.msra.mxu0 0
    %96 = vmatpush.bf16.msra.mxu0 0
    %97 = vmatpush.bf16.msra.mxu0 0
    %98 = vmatpush.bf16.msra.mxu0 0
    %99 = vmatpush.bf16.msra.mxu0 0
    %100 = vmatpush.bf16.msra.mxu0 %v87
    %101 = vmatpush.bf16.msra.mxu0 %v86
    %102 = vmatmul.bf16.gmra.mxu0 %v92
    %v103 = vpop.f32.mrf.mxu0
    %v104 = vadd.f32 %v77, %v103
    %v105 = vpop.f32.mrf.mxu0
    %106 = vdwg.mxu0
    %v107 = vmax.f32 %v104, 0.0
    %v108 = vpack.c.bf16 %v107, %v107
    %v109 = vperm.slane %v70, 1
    %v126 = vunpack.c.l.b16 %v54
    %v127 = vunpack.c.l.b16 %v55
    %v128 = vunpack.c.l.b16 %v56
    %v129 = vunpack.c.l.b16 %v57
    %v130 = vunpack.c.l.b16 %v58
    %v131 = vunpack.c.l.b16 %v59
    %v132 = vunpack.c.l.b16 %v60
    %v133 = vunpack.c.l.b16 %v61
    %v134 = vunpack.c.l.b16 %v62
    %v135 = vunpack.c.l.b16 %v63
    %v136 = vunpack.c.l.b16 %v64
    %v137 = vunpack.c.l.b16 %v65
    %v138 = vunpack.c.l.b16 %v66
    %v139 = vunpack.c.l.b16 %v67
    %v140 = vunpack.c.l.b16 %v68
    %v141 = vunpack.c.l.b16 %v69
    %v142 = vpack.c.b16 %v127, %v126
    %v143 = vpack.c.b16 %v129, %v128
    %v144 = vpack.c.b16 %v131, %v130
    %v145 = vpack.c.b16 %v133, %v132
    %v146 = vpack.c.b16 %v135, %v134
    %v147 = vpack.c.b16 %v137, %v136
    %v148 = vpack.c.b16 %v139, %v138
    %v149 = vpack.c.b16 %v141, %v140
    %158 = vmatpush.bf16.msra.mxu0 %v149
    %159 = vmatpush.bf16.msra.mxu0 %v148
    %160 = vmatpush.bf16.msra.mxu0 %v147
    %161 = vmatpush.bf16.msra.mxu0 %v146
    %162 = vmatpush.bf16.msra.mxu0 %v145
    %163 = vmatpush.bf16.msra.mxu0 %v144
    %164 = vmatpush.bf16.msra.mxu0 %v143
    %165 = vmatpush.bf16.msra.mxu0 %v142
    %166 = vmatmul.bf16.gmra.mxu0 %v108
    %v167 = vpop.f32.mrf.mxu0
    %v168 = vadd.f32 %v109, %v167
    %v169 = vpop.f32.mrf.mxu0
    %170 = vdwg.mxu0
    %171 = vmax.xlane.f32.xlu0 %v168
    %v172 = vpop.xlane.xlu0 %171
    %v173 = vsub.f32 %v168, %v172
    %v174 = vmul.f32 %v173, 1.442695
    %v175 = vpow.pop %v174
    %176 = vadd.xlane.f32.xlu0 %v175
    %v177 = vpop.xlane.xlu0 %176
    %v178 = vlog2.pop %v177
    %v179 = vmul.f32 %v178, 0.6931472
    %v180 = vlaneseq
    %v181 = vand.u32 %v180, 127
    %182 = vset.pattern.permute.xlu0 0
    %183 = vperm.xlu0 %182, %v75
    %v184 = vpop.permute.xlu0 %183
    %vm185 = vcmp.eq.s32.totalorder %v181, %v184
    %v186 = vsel %vm185, %v168, 0.0
    %187 = vadd.xlane.f32.xlu0 %v186
    %v188 = vpop.xlane.xlu0 %187
    %v189 = vadd.f32 %v172, %v179
    %v190 = vsub.f32 %v189, %v188
    %vm191 = vcmask 7168
    %v192 = vsel %vm191, %v190, 0.0
    %193 = vadd.xlane.f32.xlu0 %v192
    %v194 = vpop.xlane.xlu0 %193
    %v195 = vrot.slane %v194, 4
    %v196 = vadd.f32 %v194, %v195
    %v197 = vrot.slane %v196, 2
    %v198 = vadd.f32 %v196, %v197
    %v199 = vrot.slane %v198, 1
    %v200 = vadd.f32 %v198, %v199
    %s201 = vtos %v200
    %s202 = scalar_lea.smem [#allocation7], 0
    %203 = sst [smem:[%s202]] %s201
    // Predicated region
    $region26: #{tpu_custom_call.1} parent=1 // pred_check
      _
    $region27: #{tpu_custom_call.1} parent=1 // pred_check_branch
      %205 = sbr.rel (0) target = $region29
    $region28: #{tpu_custom_call.1} parent=1 // pred_region
      %207 = vsyncadd [#allocation4], 0
      %s209 = sshll.u32 %s4, 4
      %s210 = int_to_ptr.hbm [resolvable:$true] %s209
      %212 = dma.smem_to_hbm [#allocation7], 16, %s210, [#allocation4]
    $region29: #{tpu_custom_call.1} parent=1 // pred_fallthru
      _
    // Predicated region
    $region30: #{tpu_custom_call.1} parent=1 // pred_check
      _
    $region31: #{tpu_custom_call.1} parent=1 // pred_check_branch
      %214 = sbr.rel (0) target = $region33
    $region32: #{tpu_custom_call.1} parent=1 // pred_region
      %216 = dma.done [#allocation4], 16
    $region33: #{tpu_custom_call.1} parent=1 // pred_fallthru
      _
    %217 = sfence
    %218 = vsyncpa [#allocation3], 1
    %219 = vsyncpa [#allocation6], 1
    %220 = vsyncpa [#allocation4], 1

</llo_original>
